<compile_context>
chip_gen: v7x
topology: tpu7x:2x2x1
jax: 0.10.0
libtpu: 0.0.40
codegen_flags: <defaults>
</compile_context>

<pallas_src>
import functools
import math

import jax
import jax.numpy as jnp
from jax.experimental import pallas as pl
from jax.experimental.pallas import tpu as pltpu


EPS = 1e-6          # MAR uses partial(nn.LayerNorm, eps=1e-6) (z_proj_ln explicitly 1e-6).
VMEM_LIMIT = 32 * 1024 * 1024


def _compiler_params():
    return pltpu.CompilerParams(dimension_semantics=("parallel",),
                                vmem_limit_bytes=VMEM_LIMIT)


def _const_spec(a):
    """Full-array block with a constant index map (weights stay resident across the grid)."""
    return pl.BlockSpec(a.shape, lambda b, _nd=a.ndim: (0,) * _nd)


# --------------------------------------------------------------------------
# In-kernel math helpers
# --------------------------------------------------------------------------
def _ln(x, w, b, eps):
    mu = jnp.mean(x, axis=-1, keepdims=True)
    var = jnp.mean((x - mu) ** 2, axis=-1, keepdims=True)
    return (x - mu) * jax.lax.rsqrt(var + eps) * w + b


def _softmax(s):
    s = s - jnp.max(s, axis=-1, keepdims=True)
    e = jnp.exp(s)
    return e * pl.reciprocal(jnp.sum(e, axis=-1, keepdims=True), approx=True)


def _gelu_exact(x):
    # torch nn.GELU default (exact erf form)
    return 0.5 * x * (1.0 + jax.lax.erf(x / math.sqrt(2.0)))


# --------------------------------------------------------------------------
# Kernel: fused encoder embed
#   z_proj linear + [class-emb buffer | tokens] + enc_pos + z_proj_ln + keep-index gather
# --------------------------------------------------------------------------
def _enc_embed_kernel(x_ref, cls_ref, idx_ref, pos_ref, w_ref, b_ref, lnw_ref, lnb_ref,
                      o_ref, *, buffer_size, eps):
    buf = buffer_size
    T = pos_ref.shape[1]
    Lk = idx_ref.shape[1]
    enc = w_ref.shape[1]

    x = x_ref[0].astype(jnp.float32)                                        # (S, Cin)
    tok = jnp.dot(x, w_ref[...], preferred_element_type=jnp.float32) + b_ref[...]   # (S, enc)
    cls = jnp.broadcast_to(cls_ref[0].astype(jnp.float32), (buf, enc))      # (buf, enc)
    full = jnp.concatenate([cls, tok], axis=0) + pos_ref[0]                 # (T, enc)

    # Row gather of the kept positions as a one-hot matmul (MXU) -> no extra HBM pass.
    ids = idx_ref[0]                                                        # (Lk, 1) int32
    sel = (jax.lax.broadcasted_iota(jnp.int32, (Lk, T), 1) == ids).astype(jnp.float32)
    kept = jnp.dot(sel, full, preferred_element_type=jnp.float32)           # (Lk, enc)

    o_ref[0] = _ln(kept, lnw_ref[...], lnb_ref[...], eps).astype(o_ref.dtype)


def pallas_encoder_embed(x_tokens, class_emb, keep_idx, params, cfg):
    B, S, Cin = x_tokens.shape
    enc = cfg["enc_dim"]
    buf = cfg["buffer_size"]
    Lk = keep_idx.shape[1]
    cls3 = class_emb.reshape(B, 1, enc)
    idx3 = keep_idx.astype(jnp.int32).reshape(B, Lk, 1)
    const_args = (params["enc_pos"], params["z_proj_w"], params["z_proj_b"],
                  params["z_proj_ln_w"], params["z_proj_ln_b"])
    in_specs = [pl.BlockSpec((1, S, Cin), lambda b: (b, 0, 0)),
                pl.BlockSpec((1, 1, enc), lambda b: (b, 0, 0)),
                pl.BlockSpec((1, Lk, 1), lambda b: (b, 0, 0))]
    in_specs += [_const_spec(a) for a in const_args]
    return pl.pallas_call(
        functools.partial(_enc_embed_kernel, buffer_size=buf, eps=1e-6),
        out_shape=jax.ShapeDtypeStruct((B, Lk, enc), x_tokens.dtype),
        grid=(B,),
        in_specs=in_specs,
        out_specs=pl.BlockSpec((1, Lk, enc), lambda b: (b, 0, 0)),
        compiler_params=_compiler_params(),
    )(x_tokens, cls3, idx3, *const_args)


# --------------------------------------------------------------------------
# Kernel: timm-style pre-norm transformer Block (processes `bb` batch elements per grid step)
# --------------------------------------------------------------------------
def _block_kernel(x_ref, ln1w, ln1b, wqkv, bqkv, wproj, bproj,
                  ln2w, ln2b, wfc1, bfc1, wfc2, bfc2, o_ref,
                  *, num_heads, eps):
    Bb, L, D = x_ref.shape
    H = num_heads
    dh = D // H
    scale = dh ** -0.5
    rows = Bb * L

    x = x_ref[...].astype(jnp.float32).reshape(rows, D)

    # ---- multi-head self-attention (pre-norm); dense matmuls run over all bb*L rows ----
    h1 = _ln(x, ln1w[...], ln1b[...], eps)
    qkv = jnp.dot(h1, wqkv[...], preferred_element_type=jnp.float32) + bqkv[...]
    q = qkv[:, :D] * scale
    k = qkv[:, D:2 * D]
    v = qkv[:, 2 * D:]
    w_proj = wproj[...]

    outs = []
    for bi in range(Bb):
        r = slice(bi * L, (bi + 1) * L)
        qb, kb, vb = q[r], k[r], v[r]                                        # (L, D)
        qh = jnp.stack([qb[:, h * dh:(h + 1) * dh] for h in range(H)], axis=0)   # (H, L, dh)
        kh = jnp.stack([kb[:, h * dh:(h + 1) * dh] for h in range(H)], axis=0)
        vh = jnp.stack([vb[:, h * dh:(h + 1) * dh] for h in range(H)], axis=0)
        s = jnp.einsum("hld,hmd->hlm", qh, kh, preferred_element_type=jnp.float32)
        p = _softmax(s)
        o = jnp.einsum("hlm,hmd->hld", p, vh, preferred_element_type=jnp.float32)
        # Per-head output projection accumulation: avoids a lane-axis concatenate of heads.
        acc = jnp.dot(o[0], w_proj[:dh, :], preferred_element_type=jnp.float32)
        for h in range(1, H):
            acc = acc + jnp.dot(o[h], w_proj[h * dh:(h + 1) * dh, :],
                                preferred_element_type=jnp.float32)
        outs.append(acc)
    attn = outs[0] if Bb == 1 else jnp.concatenate(outs, axis=0)             # sublane concat
    x = x + attn + bproj[...]   # attn_drop / proj_drop / drop_path are identity in eval

    # ---- MLP (pre-norm) ----
    h2 = _ln(x, ln2w[...], ln2b[...], eps)
    y = jnp.dot(h2, wfc1[...], preferred_element_type=jnp.float32) + bfc1[...]
    y = _gelu_exact(y)
    y = jnp.dot(y, wfc2[...], preferred_element_type=jnp.float32) + bfc2[...]
    x = x + y

    o_ref[...] = x.reshape(Bb, L, D).astype(o_ref.dtype)


def _pick_block_b(batch, seq, max_rows=512):
    """Largest divisor of `batch` keeping bb*seq rows within a VMEM-friendly cap."""
    bb = 1
    for cand in range(1, batch + 1):
        if batch % cand == 0 and cand * seq <= max(seq, max_rows):
            bb = cand
    return bb


def pallas_transformer_block(x, p, num_heads, eps=EPS):
    B, L, D = x.shape
    bb = _pick_block_b(B, L)
    order = ["ln1_w", "ln1_b", "wqkv", "bqkv", "wproj", "bproj",
             "ln2_w", "ln2_b", "wfc1", "bfc1", "wfc2", "bfc2"]
    args = [p[key] for key in order]
    in_specs = [pl.BlockSpec((bb, L, D), lambda g: (g, 0, 0))]
    in_specs += [_const_spec(a) for a in args]
    return pl.pallas_call(
        functools.partial(_block_kernel, num_heads=num_heads, eps=eps),
        out_shape=jax.ShapeDtypeStruct((B, L, D), x.dtype),
        grid=(B // bb,),
        in_specs=in_specs,
        out_specs=pl.BlockSpec((bb, L, D), lambda g: (g, 0, 0)),
        compiler_params=_compiler_params(),
    )(x, *args)


# --------------------------------------------------------------------------
# Kernel: fused decoder embed
#   encoder_norm + decoder_embed linear + mask-token scatter (one-hot MXU) + dec_pos add
# --------------------------------------------------------------------------
def _dec_embed_kernel(x_ref, idx_ref, enw_ref, enb_ref, w_ref, b_ref, mtok_ref, pos_ref,
                      o_ref, *, eps):
    T = pos_ref.shape[1]
    Lk = x_ref.shape[1]

    x = x_ref[0].astype(jnp.float32)                                         # (Lk, enc)
    x = _ln(x, enw_ref[...], enb_ref[...], eps)                              # fused encoder_norm
    emb = jnp.dot(x, w_ref[...], preferred_element_type=jnp.float32) + b_ref[...]   # (Lk, dec)

    ids = idx_ref[0]                                                         # (1, Lk) int32
    sel = (jax.lax.broadcasted_iota(jnp.int32, (T, Lk), 0) == ids).astype(jnp.float32)
    scattered = jnp.dot(sel, emb, preferred_element_type=jnp.float32)        # (T, dec)
    covered = jnp.sum(sel, axis=1, keepdims=True)                            # (T, 1)
    out = scattered + (1.0 - covered) * mtok_ref[0] + pos_ref[0]
    o_ref[0] = out.astype(o_ref.dtype)


def pallas_decoder_embed(x_enc, keep_idx, params, cfg):
    B, Lk, enc = x_enc.shape
    dec = cfg["dec_dim"]
    T = cfg["buffer_size"] + cfg["seq_len"]
    idx3 = keep_idx.astype(jnp.int32).reshape(B, 1, Lk)
    const_args = (params["enc_norm_w"], params["enc_norm_b"],
                  params["dec_embed_w"], params["dec_embed_b"],
                  params["mask_token"], params["dec_pos"])
    in_specs = [pl.BlockSpec((1, Lk, enc), lambda b: (b, 0, 0)),
                pl.BlockSpec((1, 1, Lk), lambda b: (b, 0, 0))]
    in_specs += [_const_spec(a) for a in const_args]
    return pl.pallas_call(
        functools.partial(_dec_embed_kernel, eps=EPS),
        out_shape=jax.ShapeDtypeStruct((B, T, dec), x_enc.dtype),
        grid=(B,),
        in_specs=in_specs,
        out_specs=pl.BlockSpec((1, T, dec), lambda b: (b, 0, 0)),
        compiler_params=_compiler_params(),
    )(x_enc, idx3, *const_args)


# --------------------------------------------------------------------------
# Kernel: fused decoder tail: decoder_norm + drop buffer rows + diffusion pos-embed add
# --------------------------------------------------------------------------
def _dec_final_kernel(x_ref, lnw_ref, lnb_ref, pos_ref, o_ref, *, buffer_size, eps):
    x = x_ref[0].astype(jnp.float32)                 # (T, dec)
    x = x[buffer_size:]                              # static, sublane-aligned slice -> (S, dec)
    y = _ln(x, lnw_ref[...], lnb_ref[...], eps)      # LN is row-wise: slice-then-LN == LN-then-slice
    o_ref[0] = (y + pos_ref[0]).astype(o_ref.dtype)


def pallas_decoder_final(x, params, cfg):
    B, T, dec = x.shape
    S = cfg["seq_len"]
    buf = cfg["buffer_size"]
    const_args = (params["dec_norm_w"], params["dec_norm_b"], params["diff_pos"])
    in_specs = [pl.BlockSpec((1, T, dec), lambda b: (b, 0, 0))]
    in_specs += [_const_spec(a) for a in const_args]
    return pl.pallas_call(
        functools.partial(_dec_final_kernel, buffer_size=buf, eps=EPS),
        out_shape=jax.ShapeDtypeStruct((B, S, dec), x.dtype),
        grid=(B,),
        in_specs=in_specs,
        out_specs=pl.BlockSpec((1, S, dec), lambda b: (b, 0, 0)),
        compiler_params=_compiler_params(),
    )(x, *const_args)


# --------------------------------------------------------------------------
# Parameter initialization (deterministic, mirrors MAR.initialize_weights)
# --------------------------------------------------------------------------
def xavier_uniform(key, fan_in, fan_out):
    a = math.sqrt(6.0 / (fan_in + fan_out))
    return jax.random.uniform(key, (fan_in, fan_out), jnp.float32, -a, a)


def init_block_params(key, dim, mlp_hidden):
    k1, k2, k3, k4 = jax.random.split(key, 4)
    ones = jnp.ones((1, dim), jnp.float32)
    zeros = jnp.zeros((1, dim), jnp.float32)
    return dict(
        ln1_w=ones, ln1_b=zeros,
        wqkv=xavier_uniform(k1, dim, 3 * dim),
        bqkv=jnp.zeros((1, 3 * dim), jnp.float32),
        wproj=xavier_uniform(k2, dim, dim), bproj=zeros,
        ln2_w=ones, ln2_b=zeros,
        wfc1=xavier_uniform(k3, dim, mlp_hidden),
        bfc1=jnp.zeros((1, mlp_hidden), jnp.float32),
        wfc2=xavier_uniform(k4, mlp_hidden, dim), bfc2=zeros,
    )


def init_mar_params(key, cfg):
    ks = jax.random.split(key, 10)
    enc, dec = cfg["enc_dim"], cfg["dec_dim"]
    buf, S = cfg["buffer_size"], cfg["seq_len"]
    mlp_e = int(enc * cfg["mlp_ratio"])
    mlp_d = int(dec * cfg["mlp_ratio"])
    p = dict(
        class_emb=0.02 * jax.random.normal(ks[0], (cfg["class_num"], enc), jnp.float32),
        fake_latent=0.02 * jax.random.normal(ks[1], (1, enc), jnp.float32),
        z_proj_w=xavier_uniform(ks[2], cfg["token_embed_dim"], enc),
        z_proj_b=jnp.zeros((1, enc), jnp.float32),
        z_proj_ln_w=jnp.ones((1, enc), jnp.float32),
        z_proj_ln_b=jnp.zeros((1, enc), jnp.float32),
        enc_pos=0.02 * jax.random.normal(ks[3], (1, buf + S, enc), jnp.float32),
        enc_norm_w=jnp.ones((1, enc), jnp.float32),
        enc_norm_b=jnp.zeros((1, enc), jnp.float32),
        dec_embed_w=xavier_uniform(ks[4], enc, dec),
        dec_embed_b=jnp.zeros((1, dec), jnp.float32),
        mask_token=0.02 * jax.random.normal(ks[5], (1, 1, dec), jnp.float32),
        dec_pos=0.02 * jax.random.normal(ks[6], (1, buf + S, dec), jnp.float32),
        dec_norm_w=jnp.ones((1, dec), jnp.float32),
        dec_norm_b=jnp.zeros((1, dec), jnp.float32),
        diff_pos=0.02 * jax.random.normal(ks[7], (1, S, dec), jnp.float32),
    )
    p["enc_blocks"] = [init_block_params(k, enc, mlp_e)
                       for k in jax.random.split(ks[8], cfg["enc_depth"])]
    p["dec_blocks"] = [init_block_params(k, dec, mlp_d)
                       for k in jax.random.split(ks[9], cfg["dec_depth"])]
    return p


# --------------------------------------------------------------------------
# MAR forward (mirrors MAR.forward, eval semantics)
# --------------------------------------------------------------------------
def forward_mae_encoder(x_tokens, keep_idx, class_embedding, params, cfg):
    # TODO(synk): training-time label drop (rand < label_drop_prob -> fake_latent) omitted; eval semantics.
    x = pallas_encoder_embed(x_tokens, class_embedding, keep_idx, params, cfg)
    for blk in params["enc_blocks"]:
        x = pallas_transformer_block(x, blk, cfg["num_heads"])
    # encoder_norm is fused into pallas_decoder_embed (row-wise LN, identical math).
    return x


def forward_mae_decoder(x_enc, keep_idx, params, cfg):
    x = pallas_decoder_embed(x_enc, keep_idx, params, cfg)
    for blk in params["dec_blocks"]:
        x = pallas_transformer_block(x, blk, cfg["num_heads"])
    return pallas_decoder_final(x, params, cfg)


def mar_forward(imgs, labels, params, cfg, order_key):
    B, C, H, W = imgs.shape
    class_embedding = params["class_emb"][labels]                  # nn.Embedding lookup
    # patchify (patch_size=1): (B, C, H, W) -> (B, H*W, C)
    x = imgs.reshape(B, C, H * W).transpose(0, 2, 1)
    gt_latents = x
    # sample_orders: per-row random permutation (deterministic PRNGKey here)
    okeys = jax.random.split(order_key, B)
    orders = jnp.stack([jax.random.permutation(k, cfg["seq_len"]) for k in okeys])
    # TODO(synk): scipy truncnorm mask-ratio sampling replaced by fixed deterministic cfg["mask_rate"].
    num_masked = cfg["num_masked"]
    mask = jnp.zeros((B, cfg["seq_len"]), jnp.float32)
    mask = jax.vmap(lambda m, o: m.at[o[:num_masked]].set(1.0))(mask, orders)

    # kept positions (buffer positions first, then unmasked tokens, in row-major order),
    # identical to torch's (1 - mask_with_buffer).nonzero(as_tuple=True) gather.
    mask_wb = jnp.concatenate([jnp.zeros((B, cfg["buffer_size"]), mask.dtype), mask], axis=1)
    keep_idx = jnp.argsort(mask_wb, axis=-1, stable=True)[:, :cfg["num_keep"]]

    x_enc = forward_mae_encoder(x, keep_idx, class_embedding, params, cfg)
    z = forward_mae_decoder(x_enc, keep_idx, params, cfg)

    # forward_loss input prep (reshape + repeat(diffusion_batch_mul))
    mul = cfg["diffusion_batch_mul"]
    target = jnp.tile(gt_latents.reshape(B * cfg["seq_len"], -1), (mul, 1))
    z_rep = jnp.tile(z.reshape(B * cfg["seq_len"], -1), (mul, 1))
    mask_rep = jnp.tile(mask.reshape(B * cfg["seq_len"]), (mul,))
    # TODO(synk): DiffLoss/FlowLoss definitions are not provided in the reference; returning the
    # exact (z, target, mask) tensors that would be fed to self.diffloss instead of a scalar loss.
    return z_rep, target, mask_rep


# --------------------------------------------------------------------------
if __name__ == "__main__":
    cfg = dict(
        img_size=32, vae_stride=4, patch_size=1,
        vae_embed_dim=16, token_embed_dim=16,        # token_embed_dim = vae_embed_dim * p^2
        enc_dim=128, dec_dim=128, enc_depth=2, dec_depth=2, num_heads=4,
        mlp_ratio=4.0, buffer_size=16, class_num=16,
        seq_len=(32 // 4) * (32 // 4),               # 64
        diffusion_batch_mul=4,
        mask_rate=0.75,                              # chosen so num_keep is sublane-aligned
    )
    cfg["num_masked"] = int(math.ceil(cfg["seq_len"] * cfg["mask_rate"]))       # 48
    cfg["num_keep"] = cfg["buffer_size"] + cfg["seq_len"] - cfg["num_masked"]   # 32

    root = jax.random.PRNGKey(0)
    k_param, k_img, k_lbl, k_ord = jax.random.split(root, 4)
    params = init_mar_params(k_param, cfg)

    B = 2
    latent_hw = cfg["img_size"] // cfg["vae_stride"]                             # 8
    imgs = jax.random.normal(k_img, (B, cfg["vae_embed_dim"], latent_hw, latent_hw), jnp.float32)
    labels = jax.random.randint(k_lbl, (B,), 0, cfg["class_num"])

    z_rep, target_rep, mask_rep = mar_forward(imgs, labels, params, cfg, k_ord)
    jax.block_until_ready((z_rep, target_rep, mask_rep))
    assert z_rep.shape == (B * cfg["seq_len"] * cfg["diffusion_batch_mul"], cfg["dec_dim"])
    assert target_rep.shape == (B * cfg["seq_len"] * cfg["diffusion_batch_mul"], cfg["token_embed_dim"])
    assert mask_rep.shape == (B * cfg["seq_len"] * cfg["diffusion_batch_mul"],)
    print("KERNEL_OK")
</pallas_src>

<mosaic_0001>
module attributes {stable_mosaic.version = 11 : i64} {
  func.func @_enc_embed_kernel(%arg0: i32, %arg1: memref<1x64x16xf32, #tpu.memory_space<vmem>>, %arg2: memref<1x1x128xf32, #tpu.memory_space<vmem>>, %arg3: memref<1x32x1xi32, #tpu.memory_space<vmem>>, %arg4: memref<1x80x128xf32, #tpu.memory_space<vmem>>, %arg5: memref<16x128xf32, #tpu.memory_space<vmem>>, %arg6: memref<1x128xf32, #tpu.memory_space<vmem>>, %arg7: memref<1x128xf32, #tpu.memory_space<vmem>>, %arg8: memref<1x128xf32, #tpu.memory_space<vmem>>, %arg9: memref<1x32x128xf32, #tpu.memory_space<vmem>>) attributes {dimension_semantics = [#tpu.dimension_semantics<parallel>], iteration_bounds = array<i64: 2>, scalar_prefetch = 0 : i64, scratch_operands = 0 : i64, tpu.core_type = #tpu.core_type<tc>, window_params = [{transform_indices = @transform_0, window_bounds = array<i64: 1, 64, 16>}, {transform_indices = @transform_1, window_bounds = array<i64: 1, 1, 128>}, {transform_indices = @transform_2, window_bounds = array<i64: 1, 32, 1>}, {pipeline_mode = #tpu.pipeline_mode<synchronous>, transform_indices = @transform_3, window_bounds = array<i64: 1, 80, 128>}, {pipeline_mode = #tpu.pipeline_mode<synchronous>, transform_indices = @transform_4, window_bounds = array<i64: 16, 128>}, {pipeline_mode = #tpu.pipeline_mode<synchronous>, transform_indices = @transform_5, window_bounds = array<i64: 1, 128>}, {pipeline_mode = #tpu.pipeline_mode<synchronous>, transform_indices = @transform_6, window_bounds = array<i64: 1, 128>}, {pipeline_mode = #tpu.pipeline_mode<synchronous>, transform_indices = @transform_7, window_bounds = array<i64: 1, 128>}, {transform_indices = @transform_8, window_bounds = array<i64: 1, 32, 128>}]} {
    %c0 = arith.constant 0 : index
    %c0_0 = arith.constant 0 : index
    %c0_1 = arith.constant 0 : index
    %0 = vector.load %arg1[%c0, %c0_0, %c0_1] : memref<1x64x16xf32, #tpu.memory_space<vmem>>, vector<1x64x16xf32>
    %1 = vector.shape_cast %0 : vector<1x64x16xf32> to vector<64x16xf32>
    %c0_2 = arith.constant 0 : index
    %c0_3 = arith.constant 0 : index
    %2 = vector.load %arg5[%c0_2, %c0_3] : memref<16x128xf32, #tpu.memory_space<vmem>>, vector<16x128xf32>
    %cst = arith.constant dense<0.000000e+00> : vector<64x128xf32>
    %3 = tpu.matmul %1, %2, %cst {dimension_numbers = #tpu.dot_dimension_numbers<[1], [0], [0], [1], [0, 0, 1, 1], [], []>} : vector<64x16xf32>, vector<16x128xf32>, vector<64x128xf32> -> vector<64x128xf32>
    %c0_4 = arith.constant 0 : index
    %c0_5 = arith.constant 0 : index
    %4 = vector.load %arg6[%c0_4, %c0_5] : memref<1x128xf32, #tpu.memory_space<vmem>>, vector<1x128xf32>
    %5 = vector.broadcast %4 : vector<1x128xf32> to vector<64x128xf32>
    %6 = arith.addf %3, %5 : vector<64x128xf32>
    %c0_6 = arith.constant 0 : index
    %c0_7 = arith.constant 0 : index
    %c0_8 = arith.constant 0 : index
    %7 = vector.load %arg2[%c0_6, %c0_7, %c0_8] : memref<1x1x128xf32, #tpu.memory_space<vmem>>, vector<1x1x128xf32>
    %8 = vector.shape_cast %7 : vector<1x1x128xf32> to vector<1x128xf32>
    %9 = vector.shape_cast %8 : vector<1x128xf32> to vector<1x128xf32>
    %10 = vector.broadcast %9 : vector<1x128xf32> to vector<16x128xf32>
    %11 = tpu.concatenate %10, %6 in 0 : vector<16x128xf32>, vector<64x128xf32> -> vector<80x128xf32>
    %c0_9 = arith.constant 0 : index
    %c0_10 = arith.constant 0 : index
    %c0_11 = arith.constant 0 : index
    %12 = vector.load %arg4[%c0_9, %c0_10, %c0_11] : memref<1x80x128xf32, #tpu.memory_space<vmem>>, vector<1x80x128xf32>
    %13 = vector.shape_cast %12 : vector<1x80x128xf32> to vector<80x128xf32>
    %14 = arith.addf %11, %13 : vector<80x128xf32>
    %c0_12 = arith.constant 0 : index
    %c0_13 = arith.constant 0 : index
    %c0_14 = arith.constant 0 : index
    %15 = vector.load %arg3[%c0_12, %c0_13, %c0_14] : memref<1x32x1xi32, #tpu.memory_space<vmem>>, vector<1x32x1xi32>
    %16 = vector.shape_cast %15 : vector<1x32x1xi32> to vector<32x1xi32>
    %17 = tpu.iota {dimensions = array<i32: 1>} : vector<32x80xi32>
    %18 = vector.broadcast %16 : vector<32x1xi32> to vector<32x80xi32>
    %19 = arith.cmpi eq, %17, %18 : vector<32x80xi32>
    %20 = arith.extui %19 : vector<32x80xi1> to vector<32x80xi32>
    %21 = arith.sitofp %20 : vector<32x80xi32> to vector<32x80xf32>
    %cst_15 = arith.constant dense<0.000000e+00> : vector<32x128xf32>
    %22 = tpu.matmul %21, %14, %cst_15 {dimension_numbers = #tpu.dot_dimension_numbers<[1], [0], [0], [1], [0, 0, 1, 1], [], []>} : vector<32x80xf32>, vector<80x128xf32>, vector<32x128xf32> -> vector<32x128xf32>
    %c0_16 = arith.constant 0 : index
    %c0_17 = arith.constant 0 : index
    %23 = vector.load %arg7[%c0_16, %c0_17] : memref<1x128xf32, #tpu.memory_space<vmem>>, vector<1x128xf32>
    %c0_18 = arith.constant 0 : index
    %c0_19 = arith.constant 0 : index
    %24 = vector.load %arg8[%c0_18, %c0_19] : memref<1x128xf32, #tpu.memory_space<vmem>>, vector<1x128xf32>
    %cst_20 = arith.constant dense<0.000000e+00> : vector<32xf32>
    %25 = vector.multi_reduction <add>, %22, %cst_20 [1] : vector<32x128xf32> to vector<32xf32>
    %26 = vector.shape_cast %25 : vector<32xf32> to vector<32x1xf32>
    %cst_21 = arith.constant 1.280000e+02 : f32
    %27 = vector.broadcast %cst_21 : f32 to vector<32x1xf32>
    %28 = arith.divf %26, %27 : vector<32x1xf32>
    %29 = vector.broadcast %28 : vector<32x1xf32> to vector<32x128xf32>
    %30 = arith.subf %22, %29 : vector<32x128xf32>
    %31 = arith.mulf %30, %30 : vector<32x128xf32>
    %cst_22 = arith.constant dense<0.000000e+00> : vector<32xf32>
    %32 = vector.multi_reduction <add>, %31, %cst_22 [1] : vector<32x128xf32> to vector<32xf32>
    %33 = vector.shape_cast %32 : vector<32xf32> to vector<32x1xf32>
    %cst_23 = arith.constant 1.280000e+02 : f32
    %34 = vector.broadcast %cst_23 : f32 to vector<32x1xf32>
    %35 = arith.divf %33, %34 : vector<32x1xf32>
    %36 = vector.broadcast %28 : vector<32x1xf32> to vector<32x128xf32>
    %37 = arith.subf %22, %36 : vector<32x128xf32>
    %cst_24 = arith.constant 9.99999997E-7 : f32
    %38 = vector.broadcast %cst_24 : f32 to vector<32x1xf32>
    %39 = arith.addf %35, %38 : vector<32x1xf32>
    %40 = math.rsqrt %39 : vector<32x1xf32>
    %41 = vector.broadcast %40 : vector<32x1xf32> to vector<32x128xf32>
    %42 = arith.mulf %37, %41 : vector<32x128xf32>
    %43 = vector.broadcast %23 : vector<1x128xf32> to vector<32x128xf32>
    %44 = arith.mulf %42, %43 : vector<32x128xf32>
    %45 = vector.broadcast %24 : vector<1x128xf32> to vector<32x128xf32>
    %46 = arith.addf %44, %45 : vector<32x128xf32>
    %c0_25 = arith.constant 0 : index
    %c0_26 = arith.constant 0 : index
    %c0_27 = arith.constant 0 : index
    %47 = vector.load %arg9[%c0_25, %c0_26, %c0_27] : memref<1x32x128xf32, #tpu.memory_space<vmem>>, vector<1x32x128xf32>
    %48 = vector.shape_cast %47 : vector<1x32x128xf32> to vector<32x128xf32>
    %49 = vector.shape_cast %46 : vector<32x128xf32> to vector<1x32x128xf32>
    tpu.vector_store %arg9[%c0_25, %c0_26, %c0_27], %49 {strides = array<i32>} : memref<1x32x128xf32, #tpu.memory_space<vmem>>, vector<1x32x128xf32>,
    return
  }
  func.func @transform_0(%arg0: i32) -> (i32, i32, i32) {
    %c0_i32 = arith.constant 0 : i32
    %c0_i32_0 = arith.constant 0 : i32
    %c0_i32_1 = arith.constant 0 : i32
    return %arg0, %c0_i32, %c0_i32_0 : i32, i32, i32
  }
  func.func @transform_1(%arg0: i32) -> (i32, i32, i32) {
    %c0_i32 = arith.constant 0 : i32
    %c0_i32_0 = arith.constant 0 : i32
    %c0_i32_1 = arith.constant 0 : i32
    return %arg0, %c0_i32, %c0_i32_0 : i32, i32, i32
  }
  func.func @transform_2(%arg0: i32) -> (i32, i32, i32) {
    %c0_i32 = arith.constant 0 : i32
    %c0_i32_0 = arith.constant 0 : i32
    %c0_i32_1 = arith.constant 0 : i32
    return %arg0, %c0_i32, %c0_i32_0 : i32, i32, i32
  }
  func.func @transform_3(%arg0: i32) -> (i32, i32, i32) {
    %c0_i32 = arith.constant 0 : i32
    %c0_i32_0 = arith.constant 0 : i32
    %c0_i32_1 = arith.constant 0 : i32
    %c0_i32_2 = arith.constant 0 : i32
    return %c0_i32, %c0_i32_0, %c0_i32_1 : i32, i32, i32
  }
  func.func @transform_4(%arg0: i32) -> (i32, i32) {
    %c0_i32 = arith.constant 0 : i32
    %c0_i32_0 = arith.constant 0 : i32
    %c0_i32_1 = arith.constant 0 : i32
    return %c0_i32, %c0_i32_0 : i32, i32
  }
  func.func @transform_5(%arg0: i32) -> (i32, i32) {
    %c0_i32 = arith.constant 0 : i32
    %c0_i32_0 = arith.constant 0 : i32
    %c0_i32_1 = arith.constant 0 : i32
    return %c0_i32, %c0_i32_0 : i32, i32
  }
  func.func @transform_6(%arg0: i32) -> (i32, i32) {
    %c0_i32 = arith.constant 0 : i32
    %c0_i32_0 = arith.constant 0 : i32
    %c0_i32_1 = arith.constant 0 : i32
    return %c0_i32, %c0_i32_0 : i32, i32
  }
  func.func @transform_7(%arg0: i32) -> (i32, i32) {
    %c0_i32 = arith.constant 0 : i32
    %c0_i32_0 = arith.constant 0 : i32
    %c0_i32_1 = arith.constant 0 : i32
    return %c0_i32, %c0_i32_0 : i32, i32
  }
  func.func @transform_8(%arg0: i32) -> (i32, i32, i32) {
    %c0_i32 = arith.constant 0 : i32
    %c0_i32_0 = arith.constant 0 : i32
    %c0_i32_1 = arith.constant 0 : i32
    return %arg0, %c0_i32, %c0_i32_0 : i32, i32, i32
  }
}

</mosaic_0001>

<llo_original>
// kernel: tpu_custom_call.1
$region0: #{tpu_custom_call.1}
  #allocation0 [shape = 'u32[]', space=smem, size = 0x4, offset = 0x4, fixed_abs, tag = 'smem constant byte address 0x4 - core index']
  #allocation1 [shape = 'u32[144,128]{1,0:T(1,128)}', space=vmem, size = 0x12000, scoped, tag = 'internal scratch']
  %s0 = inlined_call_operand.vmem [shape: f32[2,64,16], index: 0, kind: input, shape index: {}]
  %s1 = inlined_call_operand.vmem [shape: f32[2,1,128], index: 1, kind: input, shape index: {}]
  %s2 = inlined_call_operand.vmem [shape: s32[2,32,1], index: 2, kind: input, shape index: {}]
  %s3 = inlined_call_operand.vmem [shape: f32[1,80,128], index: 3, kind: input, shape index: {}]
  %s4 = inlined_call_operand.vmem [shape: f32[16,128], index: 4, kind: input, shape index: {}]
  %s5 = inlined_call_operand.vmem [shape: f32[1,128], index: 5, kind: input, shape index: {}]
  %s6 = inlined_call_operand.vmem [shape: f32[1,128], index: 6, kind: input, shape index: {}]
  %s7 = inlined_call_operand.vmem [shape: f32[1,128], index: 7, kind: input, shape index: {}]
  %s8 = inlined_call_operand.hbm [shape: f32[2,32,128], index: 8, kind: output, shape index: {}]
  %s9 = sld [smem:[#allocation0]]
  $region65: #{tpu_custom_call.1} parent=0
    _
  %s11 = ssub.s32 1, %s9
  %s12 = scalar_select 0, %s11, %s9
  $region1: #{tpu_custom_call.1} parent=0
    #allocation2 [shape = 'u8[32768]{0}', space=vmem, size = 0x8000, scoped, tag = 'output window, operand 0']
    #allocation3 [shape = 's32[2]{0}', space=sflag, size = 0x8, scoped, tag = 'scoped memory for tpu_custom_call.1']
    %13 = vsyncpa [#allocation3], 0
    %s14 = scalar_lea.sflag [#allocation3], 1
    %15 = vsyncpa %s14, 0
    loop: start=0, step=1, limit=4
    $region2: #{tpu_custom_call.1} parent=1 // loop_pre_header
      _
    $region3: #{tpu_custom_call.1} parent=1 // loop_header
      %s17 = sphi 0, %s21
      %p18 = scmp.ge.s32.totalorder %s17, 4
      %s27 = sphi 0, %s29
      %s30 = sphi 0, %s27
      %s31 = sphi 0, %s30
      %s47 = sphi 0, %s31
      %s53 = sphi 0, %s55
      %s56 = sphi 0, %s53
      %s57 = sphi 0, %s56
      %s73 = sphi 0, %s57
      %s79 = sphi 0, %s81
      %s82 = sphi 0, %s79
      %s83 = sphi 0, %s82
      %s99 = sphi 0, %s83
      %s103 = sphi 0, %s103
      %s105 = sphi 0, %s103
      %s106 = sphi 0, %s105
      %s120 = sphi 0, %s106
      %s124 = sphi 0, %s124
      %s126 = sphi 0, %s124
      %s127 = sphi 0, %s126
      %s141 = sphi 0, %s127
      %s145 = sphi 0, %s145
      %s147 = sphi 0, %s145
      %s148 = sphi 0, %s147
      %s162 = sphi 0, %s148
      %s166 = sphi 0, %s166
      %s168 = sphi 0, %s166
      %s169 = sphi 0, %s168
      %s183 = sphi 0, %s169
      %s187 = sphi 0, %s187
      %s189 = sphi 0, %s187
      %s190 = sphi 0, %s189
      %s204 = sphi 0, %s190
      %s210 = sphi 0, %s212
      %s213 = sphi 0, %s210
      %s214 = sphi 0, %s213
      %s230 = sphi 0, %s214
    $region4: #{tpu_custom_call.1} parent=1 // loop_header_branch
      %20 = sbr.rel (%p18) target = $region8
    $region5: #{tpu_custom_call.1} parent=1 // loop_body
      %s22 = ssub.s32 %s17, 1
      %s23 = ssub.s32 %s17, 2
      %s24 = sadd.s32 %s17, 1
      %s25 = ssub.s32 %s17, %s24
      %p26 = scmp.eq.s32.totalorder %s25, 0
      %s28 = sadd.s32 %s27, 1
      %s29 = scalar_select %p26, %s27, %s28
      %p32 = pneg %p26
      %p33 = scmp.eq.s32.totalorder %s17, 1
      %p34 = por %p32, %p33
      %p35 = scmp.ne.s32.totalorder %s27, %s30
      %p36 = scmp.eq.s32.totalorder %s17, 0
      %p37 = por %p35, %p36
      %p38 = scmp.ne.s32.totalorder %s27, %s30
      %p39 = scmp.eq.s32.totalorder %s22, 1
      %p40 = por %p38, %p39
      %p41 = scmp.ne.s32.totalorder %s30, %s31
      %p42 = scmp.eq.s32.totalorder %s22, 0
      %p43 = por %p41, %p42
      %p44 = scmp.ne.s32.totalorder %s30, %s31
      %p45 = scmp.eq.s32.totalorder %s23, 1
      %p46 = por %p44, %p45
      %p48 = scmp.ne.s32.totalorder %s31, %s47
      %p49 = scmp.eq.s32.totalorder %s23, 0
      %p50 = por %p48, %p49
      %s51 = ssub.s32 %s17, %s24
      %p52 = scmp.eq.s32.totalorder %s51, 0
      %s54 = sadd.s32 %s53, 1
      %s55 = scalar_select %p52, %s53, %s54
      %p58 = pneg %p52
      %p59 = scmp.eq.s32.totalorder %s17, 1
      %p60 = por %p58, %p59
      %p61 = scmp.ne.s32.totalorder %s53, %s56
      %p62 = scmp.eq.s32.totalorder %s17, 0
      %p63 = por %p61, %p62
      %p64 = scmp.ne.s32.totalorder %s53, %s56
      %p65 = scmp.eq.s32.totalorder %s22, 1
      %p66 = por %p64, %p65
      %p67 = scmp.ne.s32.totalorder %s56, %s57
      %p68 = scmp.eq.s32.totalorder %s22, 0
      %p69 = por %p67, %p68
      %p70 = scmp.ne.s32.totalorder %s56, %s57
      %p71 = scmp.eq.s32.totalorder %s23, 1
      %p72 = por %p70, %p71
      %p74 = scmp.ne.s32.totalorder %s57, %s73
      %p75 = scmp.eq.s32.totalorder %s23, 0
      %p76 = por %p74, %p75
      %s77 = ssub.s32 %s17, %s24
      %p78 = scmp.eq.s32.totalorder %s77, 0
      %s80 = sadd.s32 %s79, 1
      %s81 = scalar_select %p78, %s79, %s80
      %p84 = pneg %p78
      %p85 = scmp.eq.s32.totalorder %s17, 1
      %p86 = por %p84, %p85
      %p87 = scmp.ne.s32.totalorder %s79, %s82
      %p88 = scmp.eq.s32.totalorder %s17, 0
      %p89 = por %p87, %p88
      %p90 = scmp.ne.s32.totalorder %s79, %s82
      %p91 = scmp.eq.s32.totalorder %s22, 1
      %p92 = por %p90, %p91
      %p93 = scmp.ne.s32.totalorder %s82, %s83
      %p94 = scmp.eq.s32.totalorder %s22, 0
      %p95 = por %p93, %p94
      %p96 = scmp.ne.s32.totalorder %s82, %s83
      %p97 = scmp.eq.s32.totalorder %s23, 1
      %p98 = por %p96, %p97
      %p100 = scmp.ne.s32.totalorder %s83, %s99
      %p101 = scmp.eq.s32.totalorder %s23, 0
      %p102 = por %p100, %p101
      %s104 = sadd.s32 %s103, 1
      %p107 = scmp.eq.s32.totalorder %s17, 1
      %p108 = scmp.ne.s32.totalorder %s103, %s105
      %p109 = scmp.eq.s32.totalorder %s17, 0
      %p110 = por %p108, %p109
      %p111 = scmp.ne.s32.totalorder %s103, %s105
      %p112 = scmp.eq.s32.totalorder %s22, 1
      %p113 = por %p111, %p112
      %p114 = scmp.ne.s32.totalorder %s105, %s106
      %p115 = scmp.eq.s32.totalorder %s22, 0
      %p116 = por %p114, %p115
      %p117 = scmp.ne.s32.totalorder %s105, %s106
      %p118 = scmp.eq.s32.totalorder %s23, 1
      %p119 = por %p117, %p118
      %p121 = scmp.ne.s32.totalorder %s106, %s120
      %p122 = scmp.eq.s32.totalorder %s23, 0
      %p123 = por %p121, %p122
      %s125 = sadd.s32 %s124, 1
      %p128 = scmp.eq.s32.totalorder %s17, 1
      %p129 = scmp.ne.s32.totalorder %s124, %s126
      %p130 = scmp.eq.s32.totalorder %s17, 0
      %p131 = por %p129, %p130
      %p132 = scmp.ne.s32.totalorder %s124, %s126
      %p133 = scmp.eq.s32.totalorder %s22, 1
      %p134 = por %p132, %p133
      %p135 = scmp.ne.s32.totalorder %s126, %s127
      %p136 = scmp.eq.s32.totalorder %s22, 0
      %p137 = por %p135, %p136
      %p138 = scmp.ne.s32.totalorder %s126, %s127
      %p139 = scmp.eq.s32.totalorder %s23, 1
      %p140 = por %p138, %p139
      %p142 = scmp.ne.s32.totalorder %s127, %s141
      %p143 = scmp.eq.s32.totalorder %s23, 0
      %p144 = por %p142, %p143
      %s146 = sadd.s32 %s145, 1
      %p149 = scmp.eq.s32.totalorder %s17, 1
      %p150 = scmp.ne.s32.totalorder %s145, %s147
      %p151 = scmp.eq.s32.totalorder %s17, 0
      %p152 = por %p150, %p151
      %p153 = scmp.ne.s32.totalorder %s145, %s147
      %p154 = scmp.eq.s32.totalorder %s22, 1
      %p155 = por %p153, %p154
      %p156 = scmp.ne.s32.totalorder %s147, %s148
      %p157 = scmp.eq.s32.totalorder %s22, 0
      %p158 = por %p156, %p157
      %p159 = scmp.ne.s32.totalorder %s147, %s148
      %p160 = scmp.eq.s32.totalorder %s23, 1
      %p161 = por %p159, %p160
      %p163 = scmp.ne.s32.totalorder %s148, %s162
      %p164 = scmp.eq.s32.totalorder %s23, 0
      %p165 = por %p163, %p164
      %s167 = sadd.s32 %s166, 1
      %p170 = scmp.eq.s32.totalorder %s17, 1
      %p171 = scmp.ne.s32.totalorder %s166, %s168
      %p172 = scmp.eq.s32.totalorder %s17, 0
      %p173 = por %p171, %p172
      %p174 = scmp.ne.s32.totalorder %s166, %s168
      %p175 = scmp.eq.s32.totalorder %s22, 1
      %p176 = por %p174, %p175
      %p177 = scmp.ne.s32.totalorder %s168, %s169
      %p178 = scmp.eq.s32.totalorder %s22, 0
      %p179 = por %p177, %p178
      %p180 = scmp.ne.s32.totalorder %s168, %s169
      %p181 = scmp.eq.s32.totalorder %s23, 1
      %p182 = por %p180, %p181
      %p184 = scmp.ne.s32.totalorder %s169, %s183
      %p185 = scmp.eq.s32.totalorder %s23, 0
      %p186 = por %p184, %p185
      %s188 = sadd.s32 %s187, 1
      %p191 = scmp.eq.s32.totalorder %s17, 1
      %p192 = scmp.ne.s32.totalorder %s187, %s189
      %p193 = scmp.eq.s32.totalorder %s17, 0
      %p194 = por %p192, %p193
      %p195 = scmp.ne.s32.totalorder %s187, %s189
      %p196 = scmp.eq.s32.totalorder %s22, 1
      %p197 = por %p195, %p196
      %p198 = scmp.ne.s32.totalorder %s189, %s190
      %p199 = scmp.eq.s32.totalorder %s22, 0
      %p200 = por %p198, %p199
      %p201 = scmp.ne.s32.totalorder %s189, %s190
      %p202 = scmp.eq.s32.totalorder %s23, 1
      %p203 = por %p201, %p202
      %p205 = scmp.ne.s32.totalorder %s190, %s204
      %p206 = scmp.eq.s32.totalorder %s23, 0
      %p207 = por %p205, %p206
      %s208 = ssub.s32 %s17, %s24
      %p209 = scmp.eq.s32.totalorder %s208, 0
      %s211 = sadd.s32 %s210, 1
      %s212 = scalar_select %p209, %s210, %s211
      %p215 = pneg %p209
      %p216 = scmp.eq.s32.totalorder %s17, 1
      %p217 = por %p215, %p216
      %p218 = scmp.ne.s32.totalorder %s210, %s213
      %p219 = scmp.eq.s32.totalorder %s17, 0
      %p220 = por %p218, %p219
      %p221 = scmp.ne.s32.totalorder %s210, %s213
      %p222 = scmp.eq.s32.totalorder %s22, 1
      %p223 = por %p221, %p222
      %p224 = scmp.ne.s32.totalorder %s213, %s214
      %p225 = scmp.eq.s32.totalorder %s22, 0
      %p226 = por %p224, %p225
      %p227 = scmp.ne.s32.totalorder %s213, %s214
      %p228 = scmp.eq.s32.totalorder %s23, 1
      %p229 = por %p227, %p228
      %p231 = scmp.ne.s32.totalorder %s214, %s230
      %p232 = scmp.eq.s32.totalorder %s23, 0
      %p233 = por %p231, %p232
      %p234 = scmp.le.s32.totalorder 1, %s17
      %p235 = scmp.lt.s32.totalorder %s17, 3
      %p236 = pnand %p234, %p235
      %p237 = pneg %p236
      // Predicated region
      $region9: #{tpu_custom_call.1} parent=5 // pred_check
        _
      $region10: #{tpu_custom_call.1} parent=5 // pred_check_branch
        %239 = sbr.rel (%p236) target = $region12
      $region11: #{tpu_custom_call.1} parent=5 // pred_region
        %s240 = ssub.s32 %s17, 1
        // Predicated region
        $region13: #{tpu_custom_call.1} parent=11 // pred_check
          %p241 = pneg %p116
        $region14: #{tpu_custom_call.1} parent=11 // pred_check_branch
          %243 = sbr.rel (%p241) target = $region16
        $region15: #{tpu_custom_call.1} parent=11 // pred_region
          _
        $region16: #{tpu_custom_call.1} parent=11 // pred_fallthru
          _
        // Predicated region
        $region17: #{tpu_custom_call.1} parent=11 // pred_check
          %p244 = pneg %p137
        $region18: #{tpu_custom_call.1} parent=11 // pred_check_branch
          %246 = sbr.rel (%p244) target = $region20
        $region19: #{tpu_custom_call.1} parent=11 // pred_region
          _
        $region20: #{tpu_custom_call.1} parent=11 // pred_fallthru
          _
        // Predicated region
        $region21: #{tpu_custom_call.1} parent=11 // pred_check
          %p247 = pneg %p158
        $region22: #{tpu_custom_call.1} parent=11 // pred_check_branch
          %249 = sbr.rel (%p247) target = $region24
        $region23: #{tpu_custom_call.1} parent=11 // pred_region
          _
        $region24: #{tpu_custom_call.1} parent=11 // pred_fallthru
          _
        // Predicated region
        $region25: #{tpu_custom_call.1} parent=11 // pred_check
          %p250 = pneg %p179
        $region26: #{tpu_custom_call.1} parent=11 // pred_check_branch
          %252 = sbr.rel (%p250) target = $region28
        $region27: #{tpu_custom_call.1} parent=11 // pred_region
          _
        $region28: #{tpu_custom_call.1} parent=11 // pred_fallthru
          _
        // Predicated region
        $region29: #{tpu_custom_call.1} parent=11 // pred_check
          %p253 = pneg %p200
        $region30: #{tpu_custom_call.1} parent=11 // pred_check_branch
          %255 = sbr.rel (%p253) target = $region32
        $region31: #{tpu_custom_call.1} parent=11 // pred_region
          _
        $region32: #{tpu_custom_call.1} parent=11 // pred_fallthru
          _
      $region12: #{tpu_custom_call.1} parent=5 // pred_fallthru
        _
      %p256 = scmp.lt.s32.totalorder %s17, 2
      // Predicated region
      $region33: #{tpu_custom_call.1} parent=5 // pred_check
        %p257 = pneg %p256
      $region34: #{tpu_custom_call.1} parent=5 // pred_check_branch
        %259 = sbr.rel (%p257) target = $region36
      $region35: #{tpu_custom_call.1} parent=5 // pred_region
        // Predicated region
        $region37: #{tpu_custom_call.1} parent=35 // pred_check
          %p260 = pneg %p37
        $region38: #{tpu_custom_call.1} parent=35 // pred_check_branch
          %262 = sbr.rel (%p260) target = $region40
        $region39: #{tpu_custom_call.1} parent=35 // pred_region
          %p263 = scmp.lt.s32.totalorder %s17, 1
          %s264 = scalar_select %p263, %s17, 1
          %s265 = smul.addr %s264, 8
          %s266 = smul.addr %s265, 8
          %s267 = scalar_lea.vmem %s0, %s266
        $region40: #{tpu_custom_call.1} parent=35 // pred_fallthru
          _
        // Predicated region
        $region41: #{tpu_custom_call.1} parent=35 // pred_check
          %p268 = pneg %p63
        $region42: #{tpu_custom_call.1} parent=35 // pred_check_branch
          %270 = sbr.rel (%p268) target = $region44
        $region43: #{tpu_custom_call.1} parent=35 // pred_region
          %p271 = scmp.lt.s32.totalorder %s17, 1
          %s272 = scalar_select %p271, %s17, 1
          %s273 = scalar_lea.vmem %s1, %s272
        $region44: #{tpu_custom_call.1} parent=35 // pred_fallthru
          _
        // Predicated region
        $region45: #{tpu_custom_call.1} parent=35 // pred_check
          %p274 = pneg %p89
        $region46: #{tpu_custom_call.1} parent=35 // pred_check_branch
          %276 = sbr.rel (%p274) target = $region48
        $region47: #{tpu_custom_call.1} parent=35 // pred_region
          %p277 = scmp.lt.s32.totalorder %s17, 1
          %s278 = scalar_select %p277, %s17, 1
          %s279 = smul.addr %s278, 4
          %s280 = smul.addr %s279, 8
          %s281 = scalar_lea.vmem %s2, %s280
        $region48: #{tpu_custom_call.1} parent=35 // pred_fallthru
          _
      $region36: #{tpu_custom_call.1} parent=5 // pred_fallthru
        _
      %p282 = scmp.le.s32.totalorder 1, %s17
      %p283 = scmp.lt.s32.totalorder %s17, 3
      %p284 = pnand %p282, %p283
      %p285 = pneg %p284
      // Predicated region
      $region49: #{tpu_custom_call.1} parent=5 // pred_check
        _
      $region50: #{tpu_custom_call.1} parent=5 // pred_check_branch
        %287 = sbr.rel (%p284) target = $region52
      $region51: #{tpu_custom_call.1} parent=5 // pred_region
        %s288 = ssub.s32 %s17, 1
        %p289 = scmp.lt.s32.totalorder %s22, 1
        %s290 = scalar_select %p289, %s22, 1
        %s291 = smul.addr %s290, 8
        %s292 = smul.addr %s291, 8
        %s293 = scalar_lea.vmem %s0, %s292
        %p294 = pneg %p43
        %p295 = pneg %p40
        %p296 = scmp.lt.s32.totalorder %s22, 1
        %s297 = scalar_select %p296, %s22, 1
        %s298 = scalar_lea.vmem %s1, %s297
        %p299 = pneg %p69
        %p300 = pneg %p66
        %p301 = scmp.lt.s32.totalorder %s22, 1
        %s302 = scalar_select %p301, %s22, 1
        %s303 = smul.addr %s302, 4
        %s304 = smul.addr %s303, 8
        %s305 = scalar_lea.vmem %s2, %s304
        %p306 = pneg %p95
        %p307 = pneg %p92
        %p308 = pneg %p116
        %p309 = pneg %p113
        %p310 = pneg %p137
        %p311 = pneg %p134
        %p312 = pneg %p158
        %p313 = pneg %p155
        %p314 = pneg %p179
        %p315 = pneg %p176
        %p316 = pneg %p200
        %p317 = pneg %p197
        %p318 = pneg %p226
        %p319 = pneg %p223
        %s320 = sand.u32 %s213, 1
        %s321 = scalar_lea.sflag [#allocation3], %s320
        %s322 = sand.u32 %s213, 1
        %s323 = smul.addr %s322, 32
        %s324 = scalar_lea.vmem [#allocation2], %s323
        %p325 = scmp.lt.s32.totalorder %s22, 1
        %s326 = scalar_select %p325, %s22, 1
        %s327 = smul.addr %s326, 8
        %s328 = smul.addr %s327, 8
        %s329 = scalar_lea.vmem %s0, %s328
        %p330 = scmp.lt.s32.totalorder %s22, 1
        %s331 = scalar_select %p330, %s22, 1
        %s332 = scalar_lea.vmem %s1, %s331
        %p333 = scmp.lt.s32.totalorder %s22, 1
        %s334 = scalar_select %p333, %s22, 1
        %s335 = smul.addr %s334, 4
        %s336 = smul.addr %s335, 8
        %s337 = scalar_lea.vmem %s2, %s336
        %v338 = vld [vmem:[%s329] sm:$0xff]
        %v339 = vld [vmem:[%s329 + $0x8] sm:$0xff]
        %v340 = vld [vmem:[%s329 + $0x10] sm:$0xff]
        %v341 = vld [vmem:[%s329 + $0x18] sm:$0xff]
        %v342 = vld [vmem:[%s329 + $0x20] sm:$0xff]
        %v343 = vld [vmem:[%s329 + $0x28] sm:$0xff]
        %v344 = vld [vmem:[%s329 + $0x30] sm:$0xff]
        %v345 = vld [vmem:[%s329 + $0x38] sm:$0xff]
        %v346 = vld [vmem:[%s4] sm:$0xff]
        %v347 = vld [vmem:[%s4 + $0x8] sm:$0xff]
        %v348 = vld [vmem:[%s5] sm:$0x1]
        %v350 = vlaneseq
        %v351 = vshrl.u32 %v350, 7
        %v352 = vsub.s32 0, %v351
        %v353 = vrot.slane %v348, %v352
        %vm355 = vcmask 130048
        %v357 = vsel %vm355, %v338, 0
        %v360 = vsel %vm355, %v339, 0
        %v363 = vsel %vm355, %v340, 0
        %v366 = vsel %vm355, %v341, 0
        %v369 = vsel %vm355, %v342, 0
        %v372 = vsel %vm355, %v343, 0
        %v375 = vsel %vm355, %v344, 0
        %v378 = vsel %vm355, %v345, 0
        %380 = vmatprep.subr.mxu0 0.0
        %381 = vmatpush1.msra.mxu0 %v346
        %382 = vmatprep.subr.mxu0 0.0
        %383 = vmatpush1.msra.mxu0 %v347
        %384 = vmatprep.subr.mxu0 0.0
        %385 = vmatpush1.msra.mxu0 0.0
        %386 = vmatprep.subr.mxu0 0.0
        %387 = vmatpush1.msra.mxu0 0.0
        %388 = vmatprep.subr.mxu0 0.0
        %389 = vmatpush1.msra.mxu0 0.0
        %390 = vmatprep.subr.mxu0 0.0
        %391 = vmatpush1.msra.mxu0 0.0
        %392 = vmatprep.subr.mxu0 0.0
        %393 = vmatpush1.msra.mxu0 0.0
        %394 = vmatprep.subr.mxu0 0.0
        %395 = vmatpush1.msra.mxu0 0.0
        %396 = vmatprep.subr.mxu0 0.0
        %397 = vmatpush1.msra.mxu0 0.0
        %398 = vmatprep.subr.mxu0 0.0
        %399 = vmatpush1.msra.mxu0 0.0
        %400 = vmatprep.subr.mxu0 0.0
        %401 = vmatpush1.msra.mxu0 0.0
        %402 = vmatprep.subr.mxu0 0.0
        %403 = vmatpush1.msra.mxu0 0.0
        %404 = vmatprep.subr.mxu0 0.0
        %405 = vmatpush1.msra.mxu0 0.0
        %406 = vmatprep.subr.mxu0 0.0
        %407 = vmatpush1.msra.mxu0 0.0
        %408 = vmatprep.subr.mxu0 0.0
        %409 = vmatpush1.msra.mxu0 0.0
        %410 = vmatprep.subr.mxu0 0.0
        %411 = vmatpush1.msra.mxu0 0.0
        %412 = vmatprep.subr.mxu0 0.0
        %413 = vmatpush1.msra.mxu0 0.0
        %414 = vmatprep.subr.mxu0 0.0
        %415 = vmatpush1.msra.mxu0 0.0
        %416 = vmatprep.subr.mxu0 0.0
        %417 = vmatpush1.msra.mxu0 0.0
        %418 = vmatprep.subr.mxu0 0.0
        %419 = vmatpush1.msra.mxu0 0.0
        %420 = vmatprep.subr.mxu0 0.0
        %421 = vmatpush1.msra.mxu0 0.0
        %422 = vmatprep.subr.mxu0 0.0
        %423 = vmatpush1.msra.mxu0 0.0
        %424 = vmatprep.subr.mxu0 0.0
        %425 = vmatpush1.msra.mxu0 0.0
        %426 = vmatprep.subr.mxu0 0.0
        %427 = vmatpush1.msra.mxu0 0.0
        %428 = vmatprep.subr.mxu0 0.0
        %429 = vmatpush1.msra.mxu0 0.0
        %430 = vmatprep.subr.mxu0 0.0
        %431 = vmatpush1.msra.mxu0 0.0
        %432 = vmatprep.subr.mxu0 0.0
        %433 = vmatpush1.msra.mxu0 0.0
        %434 = vmatprep.subr.mxu0 0.0
        %435 = vmatpush1.msra.mxu0 0.0
        %436 = vmatprep.subr.mxu0 0.0
        %437 = vmatpush1.msra.mxu0 0.0
        %438 = vmatprep.subr.mxu0 0.0
        %439 = vmatpush1.msra.mxu0 0.0
        %440 = vmatprep.subr.mxu0 0.0
        %441 = vmatpush1.msra.mxu0 0.0
        %442 = vmatprep.subr.mxu0 0.0
        %443 = vmatpush1.msra.mxu0 0.0
        %444 = vmatprep.mubr.f32.mxu0 0.0
        %445 = vmatmul.mubr.f32.gmra.mrb[0].mxu0 %v357
        %v446 = vpop.f32.mrb[0].mxu0
        %v447 = vadd.f32 %v353, %v446
        %v448 = vpop.f32.mrb[0].mxu0
        %449 = vmatprep.mubr.f32.mxu0 0.0
        %450 = vmatmul.mubr.f32.gmra.mrb[0].mxu0 %v360
        %v451 = vpop.f32.mrb[0].mxu0
        %v452 = vadd.f32 %v353, %v451
        %v453 = vpop.f32.mrb[0].mxu0
        %454 = vmatprep.mubr.f32.mxu0 0.0
        %455 = vmatmul.mubr.f32.gmra.mrb[0].mxu0 %v363
        %v456 = vpop.f32.mrb[0].mxu0
        %v457 = vadd.f32 %v353, %v456
        %v458 = vpop.f32.mrb[0].mxu0
        %459 = vmatprep.mubr.f32.mxu0 0.0
        %460 = vmatmul.mubr.f32.gmra.mrb[0].mxu0 %v366
        %v461 = vpop.f32.mrb[0].mxu0
        %v462 = vadd.f32 %v353, %v461
        %v463 = vpop.f32.mrb[0].mxu0
        %464 = vmatprep.mubr.f32.mxu0 0.0
        %465 = vmatmul.mubr.f32.gmra.mrb[0].mxu0 %v369
        %v466 = vpop.f32.mrb[0].mxu0
        %v467 = vadd.f32 %v353, %v466
        %v468 = vpop.f32.mrb[0].mxu0
        %469 = vmatprep.mubr.f32.mxu0 0.0
        %470 = vmatmul.mubr.f32.gmra.mrb[0].mxu0 %v372
        %v471 = vpop.f32.mrb[0].mxu0
        %v472 = vadd.f32 %v353, %v471
        %v473 = vpop.f32.mrb[0].mxu0
        %474 = vmatprep.mubr.f32.mxu0 0.0
        %475 = vmatmul.mubr.f32.gmra.mrb[0].mxu0 %v375
        %v476 = vpop.f32.mrb[0].mxu0
        %v477 = vadd.f32 %v353, %v476
        %v478 = vpop.f32.mrb[0].mxu0
        %479 = vmatprep.mubr.f32.mxu0 0.0
        %480 = vmatmul.mubr.f32.gmra.mrb[0].mxu0 %v378
        %v481 = vpop.f32.mrb[0].mxu0
        %v482 = vadd.f32 %v353, %v481
        %v483 = vpop.f32.mrb[0].mxu0
        %484 = vdwg.mxu0
        %v485 = vld [vmem:[%s332] sm:$0x1]
        %v487 = vlaneseq
        %v488 = vshrl.u32 %v487, 7
        %v489 = vsub.s32 0, %v488
        %v490 = vrot.slane %v485, %v489
        %v492 = vld [vmem:[%s3] sm:$0xff]
        %v493 = vld [vmem:[%s3 + $0x8] sm:$0xff]
        %v494 = vld [vmem:[%s3 + $0x10] sm:$0xff]
        %v495 = vld [vmem:[%s3 + $0x18] sm:$0xff]
        %v496 = vld [vmem:[%s3 + $0x20] sm:$0xff]
        %v497 = vld [vmem:[%s3 + $0x28] sm:$0xff]
        %v498 = vld [vmem:[%s3 + $0x30] sm:$0xff]
        %v499 = vld [vmem:[%s3 + $0x38] sm:$0xff]
        %v500 = vld [vmem:[%s3 + $0x40] sm:$0xff]
        %v501 = vld [vmem:[%s3 + $0x48] sm:$0xff]
        %v502 = vadd.f32 %v490, %v492
        %v503 = vadd.f32 %v490, %v493
        %v504 = vadd.f32 %v447, %v494
        %v505 = vadd.f32 %v452, %v495
        %v506 = vadd.f32 %v457, %v496
        %v507 = vadd.f32 %v462, %v497
        %v508 = vadd.f32 %v467, %v498
        %v509 = vadd.f32 %v472, %v499
        %v510 = vadd.f32 %v477, %v500
        %v511 = vadd.f32 %v482, %v501
        %v512 = vld [vmem:[%s337] sm:$0xff]
        %v513 = vld [vmem:[%s337 + $0x8] sm:$0xff]
        %v514 = vld [vmem:[%s337 + $0x10] sm:$0xff]
        %v515 = vld [vmem:[%s337 + $0x18] sm:$0xff]
        %v516 = vlaneseq
        %v517 = vand.u32 %v516, 127
        %518 = vset.pattern.permute.xlu0 0
        %519 = vperm.xlu0 %518, %v512
        %v520 = vpop.permute.xlu0 %519
        %521 = vset.pattern.permute.xlu0 0
        %522 = vperm.xlu0 %521, %v513
        %v523 = vpop.permute.xlu0 %522
        %524 = vset.pattern.permute.xlu0 0
        %525 = vperm.xlu0 %524, %v514
        %v526 = vpop.permute.xlu0 %525
        %527 = vset.pattern.permute.xlu0 0
        %528 = vperm.xlu0 %527, %v515
        %v529 = vpop.permute.xlu0 %528
        %vm530 = vcmp.eq.s32.totalorder %v517, %v520
        %vm531 = vcmp.eq.s32.totalorder %v517, %v523
        %vm532 = vcmp.eq.s32.totalorder %v517, %v526
        %vm533 = vcmp.eq.s32.totalorder %v517, %v529
        %v534 = vsel %vm530, 1, 0
        %v535 = vsel %vm531, 1, 0
        %v536 = vsel %vm532, 1, 0
        %v537 = vsel %vm533, 1, 0
        %v538 = vcvt.s32.f32 %v534
        %v539 = vcvt.s32.f32 %v535
        %v540 = vcvt.s32.f32 %v536
        %v541 = vcvt.s32.f32 %v537
        %vm542 = vcmask 654336
        %v544 = vsel %vm542, %v538, 0
        %v547 = vsel %vm542, %v539, 0
        %v550 = vsel %vm542, %v540, 0
        %v553 = vsel %vm542, %v541, 0
        %555 = vmatprep.subr.mxu0 0.0
        %556 = vmatpush1.msra.mxu0 %v502
        %557 = vmatprep.subr.mxu0 0.0
        %558 = vmatpush1.msra.mxu0 %v503
        %559 = vmatprep.subr.mxu0 0.0
        %560 = vmatpush1.msra.mxu0 %v504
        %561 = vmatprep.subr.mxu0 0.0
        %562 = vmatpush1.msra.mxu0 %v505
        %563 = vmatprep.subr.mxu0 0.0
        %564 = vmatpush1.msra.mxu0 %v506
        %565 = vmatprep.subr.mxu0 0.0
        %566 = vmatpush1.msra.mxu0 %v507
        %567 = vmatprep.subr.mxu0 0.0
        %568 = vmatpush1.msra.mxu0 %v508
        %569 = vmatprep.subr.mxu0 0.0
        %570 = vmatpush1.msra.mxu0 %v509
        %571 = vmatprep.subr.mxu0 0.0
        %572 = vmatpush1.msra.mxu0 %v510
        %573 = vmatprep.subr.mxu0 0.0
        %574 = vmatpush1.msra.mxu0 %v511
        %575 = vmatprep.subr.mxu0 0.0
        %576 = vmatpush1.msra.mxu0 0.0
        %577 = vmatprep.subr.mxu0 0.0
        %578 = vmatpush1.msra.mxu0 0.0
        %579 = vmatprep.subr.mxu0 0.0
        %580 = vmatpush1.msra.mxu0 0.0
        %581 = vmatprep.subr.mxu0 0.0
        %582 = vmatpush1.msra.mxu0 0.0
        %583 = vmatprep.subr.mxu0 0.0
        %584 = vmatpush1.msra.mxu0 0.0
        %585 = vmatprep.subr.mxu0 0.0
        %586 = vmatpush1.msra.mxu0 0.0
        %587 = vmatprep.subr.mxu0 0.0
        %588 = vmatpush1.msra.mxu0 0.0
        %589 = vmatprep.subr.mxu0 0.0
        %590 = vmatpush1.msra.mxu0 0.0
        %591 = vmatprep.subr.mxu0 0.0
        %592 = vmatpush1.msra.mxu0 0.0
        %593 = vmatprep.subr.mxu0 0.0
        %594 = vmatpush1.msra.mxu0 0.0
        %595 = vmatprep.subr.mxu0 0.0
        %596 = vmatpush1.msra.mxu0 0.0
        %597 = vmatprep.subr.mxu0 0.0
        %598 = vmatpush1.msra.mxu0 0.0
        %599 = vmatprep.subr.mxu0 0.0
        %600 = vmatpush1.msra.mxu0 0.0
        %601 = vmatprep.subr.mxu0 0.0
        %602 = vmatpush1.msra.mxu0 0.0
        %603 = vmatprep.subr.mxu0 0.0
        %604 = vmatpush1.msra.mxu0 0.0
        %605 = vmatprep.subr.mxu0 0.0
        %606 = vmatpush1.msra.mxu0 0.0
        %607 = vmatprep.subr.mxu0 0.0
        %608 = vmatpush1.msra.mxu0 0.0
        %609 = vmatprep.subr.mxu0 0.0
        %610 = vmatpush1.msra.mxu0 0.0
        %611 = vmatprep.subr.mxu0 0.0
        %612 = vmatpush1.msra.mxu0 0.0
        %613 = vmatprep.subr.mxu0 0.0
        %614 = vmatpush1.msra.mxu0 0.0
        %615 = vmatprep.subr.mxu0 0.0
        %616 = vmatpush1.msra.mxu0 0.0
        %617 = vmatprep.subr.mxu0 0.0
        %618 = vmatpush1.msra.mxu0 0.0
        %619 = vmatprep.mubr.f32.mxu0 0.0
        %620 = vmatmul.mubr.f32.gmra.mrb[0].mxu0 %v544
        %v621 = vpop.f32.mrb[0].mxu0
        %v622 = vadd.f32 0.0, %v621
        %v623 = vpop.f32.mrb[0].mxu0
        %624 = vmatprep.mubr.f32.mxu0 0.0
        %625 = vmatmul.mubr.f32.gmra.mrb[0].mxu0 %v547
        %v626 = vpop.f32.mrb[0].mxu0
        %v627 = vadd.f32 0.0, %v626
        %v628 = vpop.f32.mrb[0].mxu0
        %629 = vmatprep.mubr.f32.mxu0 0.0
        %630 = vmatmul.mubr.f32.gmra.mrb[0].mxu0 %v550
        %v631 = vpop.f32.mrb[0].mxu0
        %v632 = vadd.f32 0.0, %v631
        %v633 = vpop.f32.mrb[0].mxu0
        %634 = vmatprep.mubr.f32.mxu0 0.0
        %635 = vmatmul.mubr.f32.gmra.mrb[0].mxu0 %v553
        %v636 = vpop.f32.mrb[0].mxu0
        %v637 = vadd.f32 0.0, %v636
        %v638 = vpop.f32.mrb[0].mxu0
        %639 = vdwg.mxu0
        %v640 = vld [vmem:[%s6] sm:$0x1]
        %v641 = vld [vmem:[%s7] sm:$0x1]
        %642 = vadd.xlane.f32.xlu0 %v622
        %v643 = vpop.xlane.xlu0 %642
        %644 = vadd.xlane.f32.xlu0 %v627
        %v645 = vpop.xlane.xlu0 %644
        %646 = vadd.xlane.f32.xlu0 %v632
        %v647 = vpop.xlane.xlu0 %646
        %648 = vadd.xlane.f32.xlu0 %v637
        %v649 = vpop.xlane.xlu0 %648
        %v650 = vrcp.pop 128.0
        %v651 = vmul.f32 %v643, %v650
        %v652 = vmul.f32 %v645, %v650
        %v653 = vmul.f32 %v647, %v650
        %v654 = vmul.f32 %v649, %v650
        %v655 = vsub.f32 %v622, %v651
        %v656 = vsub.f32 %v627, %v652
        %v657 = vsub.f32 %v632, %v653
        %v658 = vsub.f32 %v637, %v654
        %v659 = vmul.f32 %v655, %v655
        %v660 = vmul.f32 %v656, %v656
        %v661 = vmul.f32 %v657, %v657
        %v662 = vmul.f32 %v658, %v658
        %663 = vadd.xlane.f32.xlu0 %v659
        %v664 = vpop.xlane.xlu0 %663
        %665 = vadd.xlane.f32.xlu0 %v660
        %v666 = vpop.xlane.xlu0 %665
        %667 = vadd.xlane.f32.xlu0 %v661
        %v668 = vpop.xlane.xlu0 %667
        %669 = vadd.xlane.f32.xlu0 %v662
        %v670 = vpop.xlane.xlu0 %669
        %v671 = vmul.f32 %v664, %v650
        %v672 = vmul.f32 %v666, %v650
        %v673 = vmul.f32 %v668, %v650
        %v674 = vmul.f32 %v670, %v650
        %v675 = vadd.f32 %v671, 1e-06
        %v676 = vadd.f32 %v672, 1e-06
        %v677 = vadd.f32 %v673, 1e-06
        %v678 = vadd.f32 %v674, 1e-06
        %v679 = vrsqrt.pop %v675
        %v680 = vrsqrt.pop %v676
        %v681 = vrsqrt.pop %v677
        %v682 = vrsqrt.pop %v678
        %v683 = vmul.f32 %v655, %v679
        %v684 = vmul.f32 %v656, %v680
        %v685 = vmul.f32 %v657, %v681
        %v686 = vmul.f32 %v658, %v682
        %v688 = vlaneseq
        %v689 = vshrl.u32 %v688, 7
        %v690 = vsub.s32 0, %v689
        %v691 = vrot.slane %v640, %v690
        %v693 = vmul.f32 %v683, %v691
        %v694 = vmul.f32 %v684, %v691
        %v695 = vmul.f32 %v685, %v691
        %v696 = vmul.f32 %v686, %v691
        %v698 = vlaneseq
        %v699 = vshrl.u32 %v698, 7
        %v700 = vsub.s32 0, %v699
        %v701 = vrot.slane %v641, %v700
        %v703 = vadd.f32 %v693, %v701
        %v704 = vadd.f32 %v694, %v701
        %v705 = vadd.f32 %v695, %v701
        %v706 = vadd.f32 %v696, %v701
        %707 = vst [vmem:[%s324] sm:$0xff] %v703
        %708 = vst [vmem:[%s324 + $0x8] sm:$0xff] %v704
        %709 = vst [vmem:[%s324 + $0x10] sm:$0xff] %v705
        %710 = vst [vmem:[%s324 + $0x18] sm:$0xff] %v706
        %s711 = sand.u32 %s213, 1
        %s712 = scalar_lea.sflag [#allocation3], %s711
        %s713 = sand.u32 %s213, 1
        %s714 = smul.addr %s713, 32
        %s715 = scalar_lea.vmem [#allocation2], %s714
        // Predicated region
        $region53: #{tpu_custom_call.1} parent=51 // pred_check
          %p716 = pneg %p223
        $region54: #{tpu_custom_call.1} parent=51 // pred_check_branch
          %718 = sbr.rel (%p716) target = $region56
        $region55: #{tpu_custom_call.1} parent=51 // pred_region
          %s720 = ssub.s32 512, 512
          %721 = vsyncadd %s712, %s720
          %s722 = smul.addr %s22, 4
          %s723 = smul.addr %s722, 128
          %s724 = scalar_lea.hbm %s8, %s723
          %s725 = sshll.u32 %s715, 4
          %s726 = int_to_ptr.vmem [resolvable:$true] %s725
          %731 = dma.vmem_to_hbm [thread:$0]  %s726, 512, %s724, %s712, 128, 128, 8
        $region56: #{tpu_custom_call.1} parent=51 // pred_fallthru
          _
      $region52: #{tpu_custom_call.1} parent=5 // pred_fallthru
        _
      %p732 = scmp.le.s32.totalorder 2, %s17
      // Predicated region
      $region57: #{tpu_custom_call.1} parent=5 // pred_check
        %p733 = pneg %p732
      $region58: #{tpu_custom_call.1} parent=5 // pred_check_branch
        %735 = sbr.rel (%p733) target = $region60
      $region59: #{tpu_custom_call.1} parent=5 // pred_region
        %s736 = ssub.s32 %s17, 2
        // Predicated region
        $region61: #{tpu_custom_call.1} parent=59 // pred_check
          %p737 = pneg %p229
        $region62: #{tpu_custom_call.1} parent=59 // pred_check_branch
          %739 = sbr.rel (%p737) target = $region64
        $region63: #{tpu_custom_call.1} parent=59 // pred_region
          %s740 = sand.u32 %s214, 1
          %s741 = scalar_lea.sflag [#allocation3], %s740
          %s742 = sand.u32 %s214, 1
          %s743 = smul.addr %s742, 32
          %s744 = scalar_lea.vmem [#allocation2], %s743
          %745 = dma.done %s741, 512
        $region64: #{tpu_custom_call.1} parent=59 // pred_fallthru
          _
      $region60: #{tpu_custom_call.1} parent=5 // pred_fallthru
        _
    $region6: #{tpu_custom_call.1} parent=1 // loop_footer
      %s21 = sadd.s32 1, %s17
    $region7: #{tpu_custom_call.1} parent=1 // loop_footer_branch
      %16 = sbr.rel target = $region3
    $region8: #{tpu_custom_call.1} parent=1 // loop_exit
      _
    %746 = vsyncpa [#allocation3], 1
    %s747 = scalar_lea.sflag [#allocation3], 1
    %748 = vsyncpa %s747, 1

</llo_original>
